<compile_context>
chip_gen: v6e
topology: v6e:2x2x1
jax: 0.10.0
libtpu: 0.0.40
codegen_flags: <defaults>
</compile_context>

<pallas_src>
import math

import jax
import jax.numpy as jnp
from jax.experimental import pallas as pl
from jax.experimental.pallas import tpu as pltpu


def _ggb_kernel(x_ref, w_ref, att_mu_ref, att_lv_ref, b_ref, mu_ref, lv_ref):
    # x_ref:      (N*B, Fin)   x transposed to node-major and flattened
    # w_ref:      (Fin, 2F)    [W_mu | W_lv]
    # att_mu_ref: (O, N)
    # att_lv_ref: (O, N)
    # b_ref:      (2, B*F)     per-branch biases, tiled across batch
    # mu_ref:     (O, B*F)     lane-dense mu slab
    # lv_ref:     (O, B*F)     lane-dense log_var slab
    nb, _ = x_ref.shape
    o_nodes, n_nodes = att_mu_ref.shape
    f2 = w_ref.shape[1]
    f = f2 // 2
    batch = nb // n_nodes

    # Stage 1: one MXU push for both branches.
    #   support[(n*B + b), branch*F + f] = sum_i x[b, n, i] * W_branch[i, f]
    support = jnp.dot(
        x_ref[...], w_ref[...], preferred_element_type=jnp.float32
    )                                                      # (N*B, 2F)

    # Re-view per branch as a lane-dense (N, B*F) RHS.
    # (N*B, 2F) -> (N, B, 2F) is a pure leading-dim split; the per-branch
    # (N, B, F) -> (N, B*F) merge is a flat reshape (b-major, f-minor order).
    support = support.reshape(n_nodes, batch, f2)
    sup_mu = support[:, :, :f].reshape(n_nodes, batch * f)  # (N, B*F)
    sup_lv = support[:, :, f:].reshape(n_nodes, batch * f)  # (N, B*F)

    # Stage 2: one (O, N) @ (N, B*F) push per branch; outputs stored lane-dense.
    bias = b_ref[...]                                       # (2, B*F)
    mu = jnp.dot(
        att_mu_ref[...], sup_mu, preferred_element_type=jnp.float32
    ) + bias[0:1, :]
    lv = jnp.dot(
        att_lv_ref[...], sup_lv, preferred_element_type=jnp.float32
    ) + bias[1:2, :]

    mu_ref[...] = mu.astype(mu_ref.dtype)
    lv_ref[...] = jnp.clip(lv, -20.0, 3.0).astype(lv_ref.dtype)


def graph_gaussian_block(x, w_mu, att_mu, b_mu, w_lv, att_lv, b_lv):
    """Returns (mu, log_var), matching GraphGaussianBlock.forward."""
    batch, in_nodes, in_features = x.shape
    n_z_nodes, node_n = att_mu.shape
    n_z_features = w_mu.shape[1]
    assert node_n == in_nodes, "att / input node dimension mismatch"
    assert w_mu.shape == (in_features, n_z_features)
    assert w_lv.shape == w_mu.shape and att_lv.shape == att_mu.shape
    assert b_mu.shape == (n_z_features,) and b_lv.shape == (n_z_features,)

    # Layout plumbing (cheap XLA ops outside the kernel):
    #  x -> node-major (N, B, Fin) flattened to (N*B, Fin) so the kernel needs only
    #  flat reshapes/static slices; W concatenated along Fout; biases tiled across
    #  batch to match the (O, B*F) output lane layout.
    x_t = jnp.transpose(x, (1, 0, 2)).reshape(in_nodes * batch, in_features)
    w_cat = jnp.concatenate([w_mu, w_lv], axis=1)               # (Fin, 2F)
    b_all = jnp.stack(
        [jnp.tile(b_mu, batch), jnp.tile(b_lv, batch)]
    )                                                           # (2, B*F)

    flops = 2 * (
        batch * in_nodes * in_features * (2 * n_z_features)     # x @ [W_mu|W_lv]
        + 2 * n_z_nodes * in_nodes * batch * n_z_features       # two att matmuls
    )
    bytes_accessed = 4 * (
        x_t.size + w_cat.size + att_mu.size + att_lv.size + b_all.size
        + 2 * n_z_nodes * batch * n_z_features
    )

    vmem_spec = pl.BlockSpec(memory_space=pltpu.MemorySpace.VMEM)

    mu2d, lv2d = pl.pallas_call(
        _ggb_kernel,
        out_shape=(
            jax.ShapeDtypeStruct((n_z_nodes, batch * n_z_features), x.dtype),
            jax.ShapeDtypeStruct((n_z_nodes, batch * n_z_features), x.dtype),
        ),
        in_specs=[vmem_spec] * 5,
        out_specs=(vmem_spec, vmem_spec),
        compiler_params=pltpu.CompilerParams(
            vmem_limit_bytes=32 << 20,  # safe on v5e (16 MiB default) .. v7x (32/64 MiB)
        ),
        cost_estimate=pl.CostEstimate(
            flops=flops, transcendentals=0, bytes_accessed=bytes_accessed
        ),
    )(x_t, w_cat, att_mu, att_lv, b_all)

    # Undo the lane-dense output layout: (O, B*F) -> (O, B, F) -> (B, O, F).
    mu = mu2d.reshape(n_z_nodes, batch, n_z_features).transpose(1, 0, 2)
    log_var = lv2d.reshape(n_z_nodes, batch, n_z_features).transpose(1, 0, 2)
    return mu, log_var


if __name__ == "__main__":
    # Small shapes consistent with the module.
    batch = 2
    in_nodes = 48
    in_features = 16
    n_z_nodes = 24
    n_z_features = 8

    key = jax.random.PRNGKey(0)
    keys = jax.random.split(key, 7)

    # Mirror reset_parameters(): uniform(-stdv, stdv), stdv = 1/sqrt(out_features).
    stdv = 1.0 / math.sqrt(n_z_features)

    def u(k, shape):
        return jax.random.uniform(
            k, shape, dtype=jnp.float32, minval=-stdv, maxval=stdv
        )

    w_mu = u(keys[0], (in_features, n_z_features))
    att_mu = u(keys[1], (n_z_nodes, in_nodes))
    b_mu = u(keys[2], (n_z_features,))
    w_lv = u(keys[3], (in_features, n_z_features))
    att_lv = u(keys[4], (n_z_nodes, in_nodes))
    b_lv = u(keys[5], (n_z_features,))
    x = jax.random.normal(
        keys[6], (batch, in_nodes, in_features), dtype=jnp.float32
    )

    mu, log_var = graph_gaussian_block(x, w_mu, att_mu, b_mu, w_lv, att_lv, b_lv)
    mu = jax.block_until_ready(mu)
    log_var = jax.block_until_ready(log_var)

    # Plain-JAX reference matching the PyTorch forward exactly.
    def ref_graphconv(xx, w, att, b):
        support = jnp.matmul(xx, w)              # (B, N, Fout)
        return jnp.matmul(att, support) + b      # (B, O, Fout)

    ref_mu = ref_graphconv(x, w_mu, att_mu, b_mu)
    ref_lv = jnp.clip(ref_graphconv(x, w_lv, att_lv, b_lv), -20.0, 3.0)

    assert mu.shape == (batch, n_z_nodes, n_z_features)
    assert log_var.shape == (batch, n_z_nodes, n_z_features)
    assert jnp.allclose(mu, ref_mu, atol=1e-4, rtol=1e-4)
    assert jnp.allclose(log_var, ref_lv, atol=1e-4, rtol=1e-4)

    print("KERNEL_OK")
</pallas_src>

<mosaic_0001>
module attributes {stable_mosaic.version = 11 : i64} {
  func.func @_ggb_kernel(%arg0: memref<96x16xf32, #tpu.memory_space<vmem>>, %arg1: memref<16x16xf32, #tpu.memory_space<vmem>>, %arg2: memref<24x48xf32, #tpu.memory_space<vmem>>, %arg3: memref<24x48xf32, #tpu.memory_space<vmem>>, %arg4: memref<2x16xf32, #tpu.memory_space<vmem>>, %arg5: memref<24x16xf32, #tpu.memory_space<vmem>>, %arg6: memref<24x16xf32, #tpu.memory_space<vmem>>) attributes {dimension_semantics = [], scalar_prefetch = 0 : i64, scratch_operands = 0 : i64, tpu.core_type = #tpu.core_type<tc>} {
    %c0 = arith.constant 0 : index
    %c0_0 = arith.constant 0 : index
    %0 = vector.load %arg0[%c0, %c0_0] : memref<96x16xf32, #tpu.memory_space<vmem>>, vector<96x16xf32>
    %c0_1 = arith.constant 0 : index
    %c0_2 = arith.constant 0 : index
    %1 = vector.load %arg1[%c0_1, %c0_2] : memref<16x16xf32, #tpu.memory_space<vmem>>, vector<16x16xf32>
    %cst = arith.constant dense<0.000000e+00> : vector<96x16xf32>
    %2 = tpu.matmul %0, %1, %cst {dimension_numbers = #tpu.dot_dimension_numbers<[1], [0], [0], [1], [0, 0, 1, 1], [], []>} : vector<96x16xf32>, vector<16x16xf32>, vector<96x16xf32> -> vector<96x16xf32>
    %3 = vector.shape_cast %2 : vector<96x16xf32> to vector<48x2x16xf32>
    %4 = vector.extract_strided_slice %3 {offsets = [0, 0, 0], sizes = [48, 2, 8], strides = [1, 1, 1]} : vector<48x2x16xf32> to vector<48x2x8xf32>
    %5 = vector.shape_cast %4 : vector<48x2x8xf32> to vector<48x16xf32>
    %6 = vector.extract_strided_slice %3 {offsets = [0, 0, 8], sizes = [48, 2, 8], strides = [1, 1, 1]} : vector<48x2x16xf32> to vector<48x2x8xf32>
    %7 = vector.shape_cast %6 : vector<48x2x8xf32> to vector<48x16xf32>
    %c0_3 = arith.constant 0 : index
    %c0_4 = arith.constant 0 : index
    %8 = vector.load %arg4[%c0_3, %c0_4] : memref<2x16xf32, #tpu.memory_space<vmem>>, vector<2x16xf32>
    %c0_5 = arith.constant 0 : index
    %c0_6 = arith.constant 0 : index
    %9 = vector.load %arg2[%c0_5, %c0_6] : memref<24x48xf32, #tpu.memory_space<vmem>>, vector<24x48xf32>
    %cst_7 = arith.constant dense<0.000000e+00> : vector<24x16xf32>
    %10 = tpu.matmul %9, %5, %cst_7 {dimension_numbers = #tpu.dot_dimension_numbers<[1], [0], [0], [1], [0, 0, 1, 1], [], []>} : vector<24x48xf32>, vector<48x16xf32>, vector<24x16xf32> -> vector<24x16xf32>
    %11 = vector.extract_strided_slice %8 {offsets = [0, 0], sizes = [1, 16], strides = [1, 1]} : vector<2x16xf32> to vector<1x16xf32>
    %12 = vector.broadcast %11 : vector<1x16xf32> to vector<24x16xf32>
    %13 = arith.addf %10, %12 : vector<24x16xf32>
    %c0_8 = arith.constant 0 : index
    %c0_9 = arith.constant 0 : index
    %14 = vector.load %arg3[%c0_8, %c0_9] : memref<24x48xf32, #tpu.memory_space<vmem>>, vector<24x48xf32>
    %cst_10 = arith.constant dense<0.000000e+00> : vector<24x16xf32>
    %15 = tpu.matmul %14, %7, %cst_10 {dimension_numbers = #tpu.dot_dimension_numbers<[1], [0], [0], [1], [0, 0, 1, 1], [], []>} : vector<24x48xf32>, vector<48x16xf32>, vector<24x16xf32> -> vector<24x16xf32>
    %16 = vector.extract_strided_slice %8 {offsets = [1, 0], sizes = [1, 16], strides = [1, 1]} : vector<2x16xf32> to vector<1x16xf32>
    %17 = vector.broadcast %16 : vector<1x16xf32> to vector<24x16xf32>
    %18 = arith.addf %15, %17 : vector<24x16xf32>
    %c0_11 = arith.constant 0 : index
    %c0_12 = arith.constant 0 : index
    %19 = vector.load %arg5[%c0_11, %c0_12] : memref<24x16xf32, #tpu.memory_space<vmem>>, vector<24x16xf32>
    tpu.vector_store %arg5[%c0_11, %c0_12], %13 {strides = array<i32>} : memref<24x16xf32, #tpu.memory_space<vmem>>, vector<24x16xf32>,
    %cst_13 = arith.constant -2.000000e+01 : f32
    %cst_14 = arith.constant 3.000000e+00 : f32
    %20 = vector.broadcast %cst_13 : f32 to vector<24x16xf32>
    %21 = arith.maximumf %20, %18 : vector<24x16xf32>
    %22 = vector.broadcast %cst_14 : f32 to vector<24x16xf32>
    %23 = arith.minimumf %22, %21 : vector<24x16xf32>
    %c0_15 = arith.constant 0 : index
    %c0_16 = arith.constant 0 : index
    %24 = vector.load %arg6[%c0_15, %c0_16] : memref<24x16xf32, #tpu.memory_space<vmem>>, vector<24x16xf32>
    tpu.vector_store %arg6[%c0_15, %c0_16], %23 {strides = array<i32>} : memref<24x16xf32, #tpu.memory_space<vmem>>, vector<24x16xf32>,
    return
  }
}

</mosaic_0001>

<llo_original>
// kernel: tpu_custom_call.1
$region0: #{tpu_custom_call.1}
  #allocation0 [shape = 'u32[]', space=smem, size = 0x4, offset = 0x4, fixed_abs, tag = 'smem constant byte address 0x4 - core index']
  #allocation1 [shape = 'u32[144,128]{1,0:T(1,128)}', space=vmem, size = 0x12000, scoped, tag = 'internal scratch']
  %s0 = inlined_call_operand.vmem [shape: f32[96,16], index: 0, kind: input, shape index: {}]
  %s1 = inlined_call_operand.vmem [shape: f32[16,16], index: 1, kind: input, shape index: {}]
  %s2 = inlined_call_operand.vmem [shape: f32[24,48], index: 2, kind: input, shape index: {}]
  %s3 = inlined_call_operand.vmem [shape: f32[24,48], index: 3, kind: input, shape index: {}]
  %s4 = inlined_call_operand.vmem [shape: f32[2,16], index: 4, kind: input, shape index: {}]
  %s5 = inlined_call_operand.vmem [shape: f32[24,16], index: 5, kind: output, shape index: {0}]
  %s6 = inlined_call_operand.vmem [shape: f32[24,16], index: 6, kind: output, shape index: {1}]
  %7 = xla_tuple %s5, %s6
  %s8 = sld [smem:[#allocation0]]
  $region38: #{tpu_custom_call.1} parent=0
    _
  %s10 = ssub.s32 1, %s8
  %s11 = scalar_select 0, %s10, %s8
  // Predicated region
  $region2: #{tpu_custom_call.1} parent=0 // pred_check
    _
  $region3: #{tpu_custom_call.1} parent=0 // pred_check_branch
    %13 = sbr.rel (0) target = $region5
  $region4: #{tpu_custom_call.1} parent=0 // pred_region
    _
  $region5: #{tpu_custom_call.1} parent=0 // pred_fallthru
    _
  // Predicated region
  $region6: #{tpu_custom_call.1} parent=0 // pred_check
    _
  $region7: #{tpu_custom_call.1} parent=0 // pred_check_branch
    %15 = sbr.rel (0) target = $region9
  $region8: #{tpu_custom_call.1} parent=0 // pred_region
    _
  $region9: #{tpu_custom_call.1} parent=0 // pred_fallthru
    _
  // Predicated region
  $region10: #{tpu_custom_call.1} parent=0 // pred_check
    _
  $region11: #{tpu_custom_call.1} parent=0 // pred_check_branch
    %17 = sbr.rel (0) target = $region13
  $region12: #{tpu_custom_call.1} parent=0 // pred_region
    _
  $region13: #{tpu_custom_call.1} parent=0 // pred_fallthru
    _
  // Predicated region
  $region14: #{tpu_custom_call.1} parent=0 // pred_check
    _
  $region15: #{tpu_custom_call.1} parent=0 // pred_check_branch
    %19 = sbr.rel (0) target = $region17
  $region16: #{tpu_custom_call.1} parent=0 // pred_region
    _
  $region17: #{tpu_custom_call.1} parent=0 // pred_fallthru
    _
  // Predicated region
  $region18: #{tpu_custom_call.1} parent=0 // pred_check
    _
  $region19: #{tpu_custom_call.1} parent=0 // pred_check_branch
    %21 = sbr.rel (0) target = $region21
  $region20: #{tpu_custom_call.1} parent=0 // pred_region
    _
  $region21: #{tpu_custom_call.1} parent=0 // pred_fallthru
    _
  %v22 = vld [vmem:[%s0] sm:$0xff]
  %v23 = vld [vmem:[%s0 + $0x8] sm:$0xff]
  %v24 = vld [vmem:[%s0 + $0x10] sm:$0xff]
  %v25 = vld [vmem:[%s0 + $0x18] sm:$0xff]
  %v26 = vld [vmem:[%s0 + $0x20] sm:$0xff]
  %v27 = vld [vmem:[%s0 + $0x28] sm:$0xff]
  %v28 = vld [vmem:[%s0 + $0x30] sm:$0xff]
  %v29 = vld [vmem:[%s0 + $0x38] sm:$0xff]
  %v30 = vld [vmem:[%s0 + $0x40] sm:$0xff]
  %v31 = vld [vmem:[%s0 + $0x48] sm:$0xff]
  %v32 = vld [vmem:[%s0 + $0x50] sm:$0xff]
  %v33 = vld [vmem:[%s0 + $0x58] sm:$0xff]
  %v34 = vld [vmem:[%s1] sm:$0xff]
  %v35 = vld [vmem:[%s1 + $0x8] sm:$0xff]
  %vm36 = vcmask 130048
  %v38 = vsel %vm36, %v22, 0
  %v41 = vsel %vm36, %v23, 0
  %v44 = vsel %vm36, %v24, 0
  %v47 = vsel %vm36, %v25, 0
  %v50 = vsel %vm36, %v26, 0
  %v53 = vsel %vm36, %v27, 0
  %v56 = vsel %vm36, %v28, 0
  %v59 = vsel %vm36, %v29, 0
  %v62 = vsel %vm36, %v30, 0
  %v65 = vsel %vm36, %v31, 0
  %v68 = vsel %vm36, %v32, 0
  %v71 = vsel %vm36, %v33, 0
  %73 = vmatprep.subr.mxu0 0.0
  %74 = vmatpush1.msra.mxu0 0.0
  %75 = vmatprep.subr.mxu0 0.0
  %76 = vmatpush1.msra.mxu0 0.0
  %77 = vmatprep.subr.mxu0 0.0
  %78 = vmatpush1.msra.mxu0 0.0
  %79 = vmatprep.subr.mxu0 0.0
  %80 = vmatpush1.msra.mxu0 0.0
  %81 = vmatprep.subr.mxu0 0.0
  %82 = vmatpush1.msra.mxu0 0.0
  %83 = vmatprep.subr.mxu0 0.0
  %84 = vmatpush1.msra.mxu0 0.0
  %85 = vmatprep.subr.mxu0 0.0
  %86 = vmatpush1.msra.mxu0 0.0
  %87 = vmatprep.subr.mxu0 0.0
  %88 = vmatpush1.msra.mxu0 0.0
  %89 = vmatprep.subr.mxu0 0.0
  %90 = vmatpush1.msra.mxu0 0.0
  %91 = vmatprep.subr.mxu0 0.0
  %92 = vmatpush1.msra.mxu0 0.0
  %93 = vmatprep.subr.mxu0 0.0
  %94 = vmatpush1.msra.mxu0 0.0
  %95 = vmatprep.subr.mxu0 0.0
  %96 = vmatpush1.msra.mxu0 0.0
  %97 = vmatprep.subr.mxu0 0.0
  %98 = vmatpush1.msra.mxu0 0.0
  %99 = vmatprep.subr.mxu0 0.0
  %100 = vmatpush1.msra.mxu0 0.0
  %101 = vmatprep.subr.mxu0 0.0
  %102 = vmatpush1.msra.mxu0 %v35
  %103 = vmatprep.subr.mxu0 0.0
  %104 = vmatpush1.msra.mxu0 %v34
  %105 = vmatprep.subr.mxu0 0.0
  %106 = vmatpush2.msra.mxu0 0.0
  %107 = vmatprep.subr.mxu0 0.0
  %108 = vmatpush2.msra.mxu0 0.0
  %109 = vmatprep.subr.mxu0 0.0
  %110 = vmatpush2.msra.mxu0 0.0
  %111 = vmatprep.subr.mxu0 0.0
  %112 = vmatpush2.msra.mxu0 0.0
  %113 = vmatprep.subr.mxu0 0.0
  %114 = vmatpush2.msra.mxu0 0.0
  %115 = vmatprep.subr.mxu0 0.0
  %116 = vmatpush2.msra.mxu0 0.0
  %117 = vmatprep.subr.mxu0 0.0
  %118 = vmatpush2.msra.mxu0 0.0
  %119 = vmatprep.subr.mxu0 0.0
  %120 = vmatpush2.msra.mxu0 0.0
  %121 = vmatprep.subr.mxu0 0.0
  %122 = vmatpush2.msra.mxu0 0.0
  %123 = vmatprep.subr.mxu0 0.0
  %124 = vmatpush2.msra.mxu0 0.0
  %125 = vmatprep.subr.mxu0 0.0
  %126 = vmatpush2.msra.mxu0 0.0
  %127 = vmatprep.subr.mxu0 0.0
  %128 = vmatpush2.msra.mxu0 0.0
  %129 = vmatprep.subr.mxu0 0.0
  %130 = vmatpush2.msra.mxu0 0.0
  %131 = vmatprep.subr.mxu0 0.0
  %132 = vmatpush2.msra.mxu0 0.0
  %133 = vmatprep.subr.mxu0 0.0
  %134 = vmatpush2.msra.mxu0 0.0
  %135 = vmatprep.subr.mxu0 0.0
  %136 = vmatpush2.msra.mxu0 0.0
  %137 = vmatprep.mubr.f32.mxu0 0.0
  %138 = vmatmul.mubr.f32.gmra.mxu0 %v38
  %v139 = vpop.f32.mrf.mxu0
  %v140 = vadd.f32 0.0, %v139
  %v141 = vpop.f32.mrf.mxu0
  %142 = vmatprep.mubr.f32.mxu0 0.0
  %143 = vmatmul.mubr.f32.gmra.mxu0 %v41
  %v144 = vpop.f32.mrf.mxu0
  %v145 = vadd.f32 0.0, %v144
  %v146 = vpop.f32.mrf.mxu0
  %147 = vmatprep.mubr.f32.mxu0 0.0
  %148 = vmatmul.mubr.f32.gmra.mxu0 %v44
  %v149 = vpop.f32.mrf.mxu0
  %v150 = vadd.f32 0.0, %v149
  %v151 = vpop.f32.mrf.mxu0
  %152 = vmatprep.mubr.f32.mxu0 0.0
  %153 = vmatmul.mubr.f32.gmra.mxu0 %v47
  %v154 = vpop.f32.mrf.mxu0
  %v155 = vadd.f32 0.0, %v154
  %v156 = vpop.f32.mrf.mxu0
  %157 = vmatprep.mubr.f32.mxu0 0.0
  %158 = vmatmul.mubr.f32.gmra.mxu0 %v50
  %v159 = vpop.f32.mrf.mxu0
  %v160 = vadd.f32 0.0, %v159
  %v161 = vpop.f32.mrf.mxu0
  %162 = vmatprep.mubr.f32.mxu0 0.0
  %163 = vmatmul.mubr.f32.gmra.mxu0 %v53
  %v164 = vpop.f32.mrf.mxu0
  %v165 = vadd.f32 0.0, %v164
  %v166 = vpop.f32.mrf.mxu0
  %167 = vmatprep.mubr.f32.mxu0 0.0
  %168 = vmatmul.mubr.f32.gmra.mxu0 %v56
  %v169 = vpop.f32.mrf.mxu0
  %v170 = vadd.f32 0.0, %v169
  %v171 = vpop.f32.mrf.mxu0
  %172 = vmatprep.mubr.f32.mxu0 0.0
  %173 = vmatmul.mubr.f32.gmra.mxu0 %v59
  %v174 = vpop.f32.mrf.mxu0
  %v175 = vadd.f32 0.0, %v174
  %v176 = vpop.f32.mrf.mxu0
  %177 = vmatprep.mubr.f32.mxu0 0.0
  %178 = vmatmul.mubr.f32.gmra.mxu0 %v62
  %v179 = vpop.f32.mrf.mxu0
  %v180 = vadd.f32 0.0, %v179
  %v181 = vpop.f32.mrf.mxu0
  %182 = vmatprep.mubr.f32.mxu0 0.0
  %183 = vmatmul.mubr.f32.gmra.mxu0 %v65
  %v184 = vpop.f32.mrf.mxu0
  %v185 = vadd.f32 0.0, %v184
  %v186 = vpop.f32.mrf.mxu0
  %187 = vmatprep.mubr.f32.mxu0 0.0
  %188 = vmatmul.mubr.f32.gmra.mxu0 %v68
  %v189 = vpop.f32.mrf.mxu0
  %v190 = vadd.f32 0.0, %v189
  %v191 = vpop.f32.mrf.mxu0
  %192 = vmatprep.mubr.f32.mxu0 0.0
  %193 = vmatmul.mubr.f32.gmra.mxu0 %v71
  %v194 = vpop.f32.mrf.mxu0
  %v195 = vadd.f32 0.0, %v194
  %v196 = vpop.f32.mrf.mxu0
  %197 = vdwg.mxu0
  %v210 = vcombine.high %v140, %v140
  %v212 = vunpack.c.l.s4 1983009808
  %v213 = vunpack.c.0.s8 %v212
  %v214 = vlaneseq
  %v215 = vshrl.u32 %v214, 7
  %v216 = vsub.s32 %v213, %v215
  %v217 = vrot.slane %v140, %v216
  %v219 = vunpack.c.l.s4 1983009808
  %v220 = vunpack.c.0.s8 %v219
  %v221 = vlaneseq
  %v222 = vshrl.u32 %v221, 7
  %v223 = vsub.s32 %v220, %v222
  %v224 = vrot.slane %v210, %v223
  %v225 = vcombine.high %v217, %v217
  %v226 = vcombine.high %v224, %v224
  %v227 = vcombine.high %v145, %v145
  %v229 = vunpack.c.l.s4 1983009808
  %v230 = vunpack.c.0.s8 %v229
  %v231 = vlaneseq
  %v232 = vshrl.u32 %v231, 7
  %v233 = vsub.s32 %v230, %v232
  %v234 = vrot.slane %v145, %v233
  %v236 = vunpack.c.l.s4 1983009808
  %v237 = vunpack.c.0.s8 %v236
  %v238 = vlaneseq
  %v239 = vshrl.u32 %v238, 7
  %v240 = vsub.s32 %v237, %v239
  %v241 = vrot.slane %v227, %v240
  %v242 = vcombine.high %v234, %v234
  %v243 = vcombine.high %v241, %v241
  %v244 = vcombine.high %v150, %v150
  %v246 = vunpack.c.l.s4 1983009808
  %v247 = vunpack.c.0.s8 %v246
  %v248 = vlaneseq
  %v249 = vshrl.u32 %v248, 7
  %v250 = vsub.s32 %v247, %v249
  %v251 = vrot.slane %v150, %v250
  %v253 = vunpack.c.l.s4 1983009808
  %v254 = vunpack.c.0.s8 %v253
  %v255 = vlaneseq
  %v256 = vshrl.u32 %v255, 7
  %v257 = vsub.s32 %v254, %v256
  %v258 = vrot.slane %v244, %v257
  %v259 = vcombine.high %v251, %v251
  %v260 = vcombine.high %v258, %v258
  %v261 = vcombine.high %v155, %v155
  %v263 = vunpack.c.l.s4 1983009808
  %v264 = vunpack.c.0.s8 %v263
  %v265 = vlaneseq
  %v266 = vshrl.u32 %v265, 7
  %v267 = vsub.s32 %v264, %v266
  %v268 = vrot.slane %v155, %v267
  %v270 = vunpack.c.l.s4 1983009808
  %v271 = vunpack.c.0.s8 %v270
  %v272 = vlaneseq
  %v273 = vshrl.u32 %v272, 7
  %v274 = vsub.s32 %v271, %v273
  %v275 = vrot.slane %v261, %v274
  %v276 = vcombine.high %v268, %v268
  %v277 = vcombine.high %v275, %v275
  %v278 = vcombine.high %v160, %v160
  %v280 = vunpack.c.l.s4 1983009808
  %v281 = vunpack.c.0.s8 %v280
  %v282 = vlaneseq
  %v283 = vshrl.u32 %v282, 7
  %v284 = vsub.s32 %v281, %v283
  %v285 = vrot.slane %v160, %v284
  %v287 = vunpack.c.l.s4 1983009808
  %v288 = vunpack.c.0.s8 %v287
  %v289 = vlaneseq
  %v290 = vshrl.u32 %v289, 7
  %v291 = vsub.s32 %v288, %v290
  %v292 = vrot.slane %v278, %v291
  %v293 = vcombine.high %v285, %v285
  %v294 = vcombine.high %v292, %v292
  %v295 = vcombine.high %v165, %v165
  %v297 = vunpack.c.l.s4 1983009808
  %v298 = vunpack.c.0.s8 %v297
  %v299 = vlaneseq
  %v300 = vshrl.u32 %v299, 7
  %v301 = vsub.s32 %v298, %v300
  %v302 = vrot.slane %v165, %v301
  %v304 = vunpack.c.l.s4 1983009808
  %v305 = vunpack.c.0.s8 %v304
  %v306 = vlaneseq
  %v307 = vshrl.u32 %v306, 7
  %v308 = vsub.s32 %v305, %v307
  %v309 = vrot.slane %v295, %v308
  %v310 = vcombine.high %v302, %v302
  %v311 = vcombine.high %v309, %v309
  %v312 = vcombine.high %v170, %v170
  %v314 = vunpack.c.l.s4 1983009808
  %v315 = vunpack.c.0.s8 %v314
  %v316 = vlaneseq
  %v317 = vshrl.u32 %v316, 7
  %v318 = vsub.s32 %v315, %v317
  %v319 = vrot.slane %v170, %v318
  %v321 = vunpack.c.l.s4 1983009808
  %v322 = vunpack.c.0.s8 %v321
  %v323 = vlaneseq
  %v324 = vshrl.u32 %v323, 7
  %v325 = vsub.s32 %v322, %v324
  %v326 = vrot.slane %v312, %v325
  %v327 = vcombine.high %v319, %v319
  %v328 = vcombine.high %v326, %v326
  %v329 = vcombine.high %v175, %v175
  %v331 = vunpack.c.l.s4 1983009808
  %v332 = vunpack.c.0.s8 %v331
  %v333 = vlaneseq
  %v334 = vshrl.u32 %v333, 7
  %v335 = vsub.s32 %v332, %v334
  %v336 = vrot.slane %v175, %v335
  %v338 = vunpack.c.l.s4 1983009808
  %v339 = vunpack.c.0.s8 %v338
  %v340 = vlaneseq
  %v341 = vshrl.u32 %v340, 7
  %v342 = vsub.s32 %v339, %v341
  %v343 = vrot.slane %v329, %v342
  %v344 = vcombine.high %v336, %v336
  %v345 = vcombine.high %v343, %v343
  %v346 = vcombine.high %v180, %v180
  %v348 = vunpack.c.l.s4 1983009808
  %v349 = vunpack.c.0.s8 %v348
  %v350 = vlaneseq
  %v351 = vshrl.u32 %v350, 7
  %v352 = vsub.s32 %v349, %v351
  %v353 = vrot.slane %v180, %v352
  %v355 = vunpack.c.l.s4 1983009808
  %v356 = vunpack.c.0.s8 %v355
  %v357 = vlaneseq
  %v358 = vshrl.u32 %v357, 7
  %v359 = vsub.s32 %v356, %v358
  %v360 = vrot.slane %v346, %v359
  %v361 = vcombine.high %v353, %v353
  %v362 = vcombine.high %v360, %v360
  %v363 = vcombine.high %v185, %v185
  %v365 = vunpack.c.l.s4 1983009808
  %v366 = vunpack.c.0.s8 %v365
  %v367 = vlaneseq
  %v368 = vshrl.u32 %v367, 7
  %v369 = vsub.s32 %v366, %v368
  %v370 = vrot.slane %v185, %v369
  %v372 = vunpack.c.l.s4 1983009808
  %v373 = vunpack.c.0.s8 %v372
  %v374 = vlaneseq
  %v375 = vshrl.u32 %v374, 7
  %v376 = vsub.s32 %v373, %v375
  %v377 = vrot.slane %v363, %v376
  %v378 = vcombine.high %v370, %v370
  %v379 = vcombine.high %v377, %v377
  %v380 = vcombine.high %v190, %v190
  %v382 = vunpack.c.l.s4 1983009808
  %v383 = vunpack.c.0.s8 %v382
  %v384 = vlaneseq
  %v385 = vshrl.u32 %v384, 7
  %v386 = vsub.s32 %v383, %v385
  %v387 = vrot.slane %v190, %v386
  %v389 = vunpack.c.l.s4 1983009808
  %v390 = vunpack.c.0.s8 %v389
  %v391 = vlaneseq
  %v392 = vshrl.u32 %v391, 7
  %v393 = vsub.s32 %v390, %v392
  %v394 = vrot.slane %v380, %v393
  %v395 = vcombine.high %v387, %v387
  %v396 = vcombine.high %v394, %v394
  %v397 = vcombine.high %v195, %v195
  %v399 = vunpack.c.l.s4 1983009808
  %v400 = vunpack.c.0.s8 %v399
  %v401 = vlaneseq
  %v402 = vshrl.u32 %v401, 7
  %v403 = vsub.s32 %v400, %v402
  %v404 = vrot.slane %v195, %v403
  %v406 = vunpack.c.l.s4 1983009808
  %v407 = vunpack.c.0.s8 %v406
  %v408 = vlaneseq
  %v409 = vshrl.u32 %v408, 7
  %v410 = vsub.s32 %v407, %v409
  %v411 = vrot.slane %v397, %v410
  %v412 = vcombine.high %v404, %v404
  %v413 = vcombine.high %v411, %v411
  %v462 = vcombine.low %v217, %v225
  %v464 = vunpack.c.l.s4 1934713408
  %v465 = vunpack.c.0.s8 %v464
  %v466 = vlaneseq
  %v467 = vshrl.u32 %v466, 7
  %v468 = vsub.s32 %v465, %v467
  %v469 = vrot.slane %v462, %v468
  %v470 = vcombine.high %v469, 0.0
  %v471 = vcombine.low %v224, %v226
  %v473 = vunpack.c.l.s4 1934713408
  %v474 = vunpack.c.0.s8 %v473
  %v475 = vlaneseq
  %v476 = vshrl.u32 %v475, 7
  %v477 = vsub.s32 %v474, %v476
  %v478 = vrot.slane %v471, %v477
  %v479 = vcombine.high %v478, 0.0
  %v480 = vcombine.low %v234, %v242
  %v482 = vunpack.c.l.s4 1934713408
  %v483 = vunpack.c.0.s8 %v482
  %v484 = vlaneseq
  %v485 = vshrl.u32 %v484, 7
  %v486 = vsub.s32 %v483, %v485
  %v487 = vrot.slane %v480, %v486
  %v488 = vcombine.high %v487, 0.0
  %v489 = vcombine.low %v241, %v243
  %v491 = vunpack.c.l.s4 1934713408
  %v492 = vunpack.c.0.s8 %v491
  %v493 = vlaneseq
  %v494 = vshrl.u32 %v493, 7
  %v495 = vsub.s32 %v492, %v494
  %v496 = vrot.slane %v489, %v495
  %v497 = vcombine.high %v496, 0.0
  %v498 = vcombine.low %v251, %v259
  %v500 = vunpack.c.l.s4 1934713408
  %v501 = vunpack.c.0.s8 %v500
  %v502 = vlaneseq
  %v503 = vshrl.u32 %v502, 7
  %v504 = vsub.s32 %v501, %v503
  %v505 = vrot.slane %v498, %v504
  %v506 = vcombine.high %v505, 0.0
  %v507 = vcombine.low %v258, %v260
  %v509 = vunpack.c.l.s4 1934713408
  %v510 = vunpack.c.0.s8 %v509
  %v511 = vlaneseq
  %v512 = vshrl.u32 %v511, 7
  %v513 = vsub.s32 %v510, %v512
  %v514 = vrot.slane %v507, %v513
  %v515 = vcombine.high %v514, 0.0
  %v516 = vcombine.low %v268, %v276
  %v518 = vunpack.c.l.s4 1934713408
  %v519 = vunpack.c.0.s8 %v518
  %v520 = vlaneseq
  %v521 = vshrl.u32 %v520, 7
  %v522 = vsub.s32 %v519, %v521
  %v523 = vrot.slane %v516, %v522
  %v524 = vcombine.high %v523, 0.0
  %v525 = vcombine.low %v275, %v277
  %v527 = vunpack.c.l.s4 1934713408
  %v528 = vunpack.c.0.s8 %v527
  %v529 = vlaneseq
  %v530 = vshrl.u32 %v529, 7
  %v531 = vsub.s32 %v528, %v530
  %v532 = vrot.slane %v525, %v531
  %v533 = vcombine.high %v532, 0.0
  %v534 = vcombine.low %v285, %v293
  %v536 = vunpack.c.l.s4 1934713408
  %v537 = vunpack.c.0.s8 %v536
  %v538 = vlaneseq
  %v539 = vshrl.u32 %v538, 7
  %v540 = vsub.s32 %v537, %v539
  %v541 = vrot.slane %v534, %v540
  %v542 = vcombine.high %v541, 0.0
  %v543 = vcombine.low %v292, %v294
  %v545 = vunpack.c.l.s4 1934713408
  %v546 = vunpack.c.0.s8 %v545
  %v547 = vlaneseq
  %v548 = vshrl.u32 %v547, 7
  %v549 = vsub.s32 %v546, %v548
  %v550 = vrot.slane %v543, %v549
  %v551 = vcombine.high %v550, 0.0
  %v552 = vcombine.low %v302, %v310
  %v554 = vunpack.c.l.s4 1934713408
  %v555 = vunpack.c.0.s8 %v554
  %v556 = vlaneseq
  %v557 = vshrl.u32 %v556, 7
  %v558 = vsub.s32 %v555, %v557
  %v559 = vrot.slane %v552, %v558
  %v560 = vcombine.high %v559, 0.0
  %v561 = vcombine.low %v309, %v311
  %v563 = vunpack.c.l.s4 1934713408
  %v564 = vunpack.c.0.s8 %v563
  %v565 = vlaneseq
  %v566 = vshrl.u32 %v565, 7
  %v567 = vsub.s32 %v564, %v566
  %v568 = vrot.slane %v561, %v567
  %v569 = vcombine.high %v568, 0.0
  %v570 = vcombine.low %v319, %v327
  %v572 = vunpack.c.l.s4 1934713408
  %v573 = vunpack.c.0.s8 %v572
  %v574 = vlaneseq
  %v575 = vshrl.u32 %v574, 7
  %v576 = vsub.s32 %v573, %v575
  %v577 = vrot.slane %v570, %v576
  %v578 = vcombine.high %v577, 0.0
  %v579 = vcombine.low %v326, %v328
  %v581 = vunpack.c.l.s4 1934713408
  %v582 = vunpack.c.0.s8 %v581
  %v583 = vlaneseq
  %v584 = vshrl.u32 %v583, 7
  %v585 = vsub.s32 %v582, %v584
  %v586 = vrot.slane %v579, %v585
  %v587 = vcombine.high %v586, 0.0
  %v588 = vcombine.low %v336, %v344
  %v590 = vunpack.c.l.s4 1934713408
  %v591 = vunpack.c.0.s8 %v590
  %v592 = vlaneseq
  %v593 = vshrl.u32 %v592, 7
  %v594 = vsub.s32 %v591, %v593
  %v595 = vrot.slane %v588, %v594
  %v596 = vcombine.high %v595, 0.0
  %v597 = vcombine.low %v343, %v345
  %v599 = vunpack.c.l.s4 1934713408
  %v600 = vunpack.c.0.s8 %v599
  %v601 = vlaneseq
  %v602 = vshrl.u32 %v601, 7
  %v603 = vsub.s32 %v600, %v602
  %v604 = vrot.slane %v597, %v603
  %v605 = vcombine.high %v604, 0.0
  %v606 = vcombine.low %v353, %v361
  %v608 = vunpack.c.l.s4 1934713408
  %v609 = vunpack.c.0.s8 %v608
  %v610 = vlaneseq
  %v611 = vshrl.u32 %v610, 7
  %v612 = vsub.s32 %v609, %v611
  %v613 = vrot.slane %v606, %v612
  %v614 = vcombine.high %v613, 0.0
  %v615 = vcombine.low %v360, %v362
  %v617 = vunpack.c.l.s4 1934713408
  %v618 = vunpack.c.0.s8 %v617
  %v619 = vlaneseq
  %v620 = vshrl.u32 %v619, 7
  %v621 = vsub.s32 %v618, %v620
  %v622 = vrot.slane %v615, %v621
  %v623 = vcombine.high %v622, 0.0
  %v624 = vcombine.low %v370, %v378
  %v626 = vunpack.c.l.s4 1934713408
  %v627 = vunpack.c.0.s8 %v626
  %v628 = vlaneseq
  %v629 = vshrl.u32 %v628, 7
  %v630 = vsub.s32 %v627, %v629
  %v631 = vrot.slane %v624, %v630
  %v632 = vcombine.high %v631, 0.0
  %v633 = vcombine.low %v377, %v379
  %v635 = vunpack.c.l.s4 1934713408
  %v636 = vunpack.c.0.s8 %v635
  %v637 = vlaneseq
  %v638 = vshrl.u32 %v637, 7
  %v639 = vsub.s32 %v636, %v638
  %v640 = vrot.slane %v633, %v639
  %v641 = vcombine.high %v640, 0.0
  %v642 = vcombine.low %v387, %v395
  %v644 = vunpack.c.l.s4 1934713408
  %v645 = vunpack.c.0.s8 %v644
  %v646 = vlaneseq
  %v647 = vshrl.u32 %v646, 7
  %v648 = vsub.s32 %v645, %v647
  %v649 = vrot.slane %v642, %v648
  %v650 = vcombine.high %v649, 0.0
  %v651 = vcombine.low %v394, %v396
  %v653 = vunpack.c.l.s4 1934713408
  %v654 = vunpack.c.0.s8 %v653
  %v655 = vlaneseq
  %v656 = vshrl.u32 %v655, 7
  %v657 = vsub.s32 %v654, %v656
  %v658 = vrot.slane %v651, %v657
  %v659 = vcombine.high %v658, 0.0
  %v660 = vcombine.low %v404, %v412
  %v662 = vunpack.c.l.s4 1934713408
  %v663 = vunpack.c.0.s8 %v662
  %v664 = vlaneseq
  %v665 = vshrl.u32 %v664, 7
  %v666 = vsub.s32 %v663, %v665
  %v667 = vrot.slane %v660, %v666
  %v668 = vcombine.high %v667, 0.0
  %v669 = vcombine.low %v411, %v413
  %v671 = vunpack.c.l.s4 1934713408
  %v672 = vunpack.c.0.s8 %v671
  %v673 = vlaneseq
  %v674 = vshrl.u32 %v673, 7
  %v675 = vsub.s32 %v672, %v674
  %v676 = vrot.slane %v669, %v675
  %v677 = vcombine.high %v676, 0.0
  %v702 = vcombine.low %v469, %v478
  %v703 = vcombine.low %v487, %v496
  %v705 = vunpack.c.l.s4 1983009808
  %v706 = vunpack.c.0.s8 %v705
  %v707 = vlaneseq
  %v708 = vshrl.u32 %v707, 7
  %v709 = vsub.s32 %v706, %v708
  %v710 = vrot.slane %v702, %v709
  %v712 = vunpack.c.l.s4 1983009808
  %v713 = vunpack.c.0.s8 %v712
  %v714 = vlaneseq
  %v715 = vshrl.u32 %v714, 7
  %v716 = vsub.s32 %v713, %v715
  %v717 = vrot.slane %v703, %v716
  %v718 = vcombine.low %v710, %v717
  %v719 = vcombine.low %v505, %v514
  %v720 = vcombine.low %v523, %v532
  %v722 = vunpack.c.l.s4 1983009808
  %v723 = vunpack.c.0.s8 %v722
  %v724 = vlaneseq
  %v725 = vshrl.u32 %v724, 7
  %v726 = vsub.s32 %v723, %v725
  %v727 = vrot.slane %v719, %v726
  %v729 = vunpack.c.l.s4 1983009808
  %v730 = vunpack.c.0.s8 %v729
  %v731 = vlaneseq
  %v732 = vshrl.u32 %v731, 7
  %v733 = vsub.s32 %v730, %v732
  %v734 = vrot.slane %v720, %v733
  %v735 = vcombine.low %v727, %v734
  %v736 = vcombine.low %v541, %v550
  %v737 = vcombine.low %v559, %v568
  %v739 = vunpack.c.l.s4 1983009808
  %v740 = vunpack.c.0.s8 %v739
  %v741 = vlaneseq
  %v742 = vshrl.u32 %v741, 7
  %v743 = vsub.s32 %v740, %v742
  %v744 = vrot.slane %v736, %v743
  %v746 = vunpack.c.l.s4 1983009808
  %v747 = vunpack.c.0.s8 %v746
  %v748 = vlaneseq
  %v749 = vshrl.u32 %v748, 7
  %v750 = vsub.s32 %v747, %v749
  %v751 = vrot.slane %v737, %v750
  %v752 = vcombine.low %v744, %v751
  %v753 = vcombine.low %v577, %v586
  %v754 = vcombine.low %v595, %v604
  %v756 = vunpack.c.l.s4 1983009808
  %v757 = vunpack.c.0.s8 %v756
  %v758 = vlaneseq
  %v759 = vshrl.u32 %v758, 7
  %v760 = vsub.s32 %v757, %v759
  %v761 = vrot.slane %v753, %v760
  %v763 = vunpack.c.l.s4 1983009808
  %v764 = vunpack.c.0.s8 %v763
  %v765 = vlaneseq
  %v766 = vshrl.u32 %v765, 7
  %v767 = vsub.s32 %v764, %v766
  %v768 = vrot.slane %v754, %v767
  %v769 = vcombine.low %v761, %v768
  %v770 = vcombine.low %v613, %v622
  %v771 = vcombine.low %v631, %v640
  %v773 = vunpack.c.l.s4 1983009808
  %v774 = vunpack.c.0.s8 %v773
  %v775 = vlaneseq
  %v776 = vshrl.u32 %v775, 7
  %v777 = vsub.s32 %v774, %v776
  %v778 = vrot.slane %v770, %v777
  %v780 = vunpack.c.l.s4 1983009808
  %v781 = vunpack.c.0.s8 %v780
  %v782 = vlaneseq
  %v783 = vshrl.u32 %v782, 7
  %v784 = vsub.s32 %v781, %v783
  %v785 = vrot.slane %v771, %v784
  %v786 = vcombine.low %v778, %v785
  %v787 = vcombine.low %v649, %v658
  %v788 = vcombine.low %v667, %v676
  %v790 = vunpack.c.l.s4 1983009808
  %v791 = vunpack.c.0.s8 %v790
  %v792 = vlaneseq
  %v793 = vshrl.u32 %v792, 7
  %v794 = vsub.s32 %v791, %v793
  %v795 = vrot.slane %v787, %v794
  %v797 = vunpack.c.l.s4 1983009808
  %v798 = vunpack.c.0.s8 %v797
  %v799 = vlaneseq
  %v800 = vshrl.u32 %v799, 7
  %v801 = vsub.s32 %v798, %v800
  %v802 = vrot.slane %v788, %v801
  %v803 = vcombine.low %v795, %v802
  %v834 = vcombine.low %v470, %v479
  %v835 = vcombine.low %v488, %v497
  %v837 = vunpack.c.l.s4 1983009808
  %v838 = vunpack.c.0.s8 %v837
  %v839 = vlaneseq
  %v840 = vshrl.u32 %v839, 7
  %v841 = vsub.s32 %v838, %v840
  %v842 = vrot.slane %v834, %v841
  %v844 = vunpack.c.l.s4 1983009808
  %v845 = vunpack.c.0.s8 %v844
  %v846 = vlaneseq
  %v847 = vshrl.u32 %v846, 7
  %v848 = vsub.s32 %v845, %v847
  %v849 = vrot.slane %v835, %v848
  %v850 = vcombine.low %v842, %v849
  %v851 = vcombine.low %v506, %v515
  %v852 = vcombine.low %v524, %v533
  %v854 = vunpack.c.l.s4 1983009808
  %v855 = vunpack.c.0.s8 %v854
  %v856 = vlaneseq
  %v857 = vshrl.u32 %v856, 7
  %v858 = vsub.s32 %v855, %v857
  %v859 = vrot.slane %v851, %v858
  %v861 = vunpack.c.l.s4 1983009808
  %v862 = vunpack.c.0.s8 %v861
  %v863 = vlaneseq
  %v864 = vshrl.u32 %v863, 7
  %v865 = vsub.s32 %v862, %v864
  %v866 = vrot.slane %v852, %v865
  %v867 = vcombine.low %v859, %v866
  %v868 = vcombine.low %v542, %v551
  %v869 = vcombine.low %v560, %v569
  %v871 = vunpack.c.l.s4 1983009808
  %v872 = vunpack.c.0.s8 %v871
  %v873 = vlaneseq
  %v874 = vshrl.u32 %v873, 7
  %v875 = vsub.s32 %v872, %v874
  %v876 = vrot.slane %v868, %v875
  %v878 = vunpack.c.l.s4 1983009808
  %v879 = vunpack.c.0.s8 %v878
  %v880 = vlaneseq
  %v881 = vshrl.u32 %v880, 7
  %v882 = vsub.s32 %v879, %v881
  %v883 = vrot.slane %v869, %v882
  %v884 = vcombine.low %v876, %v883
  %v885 = vcombine.low %v578, %v587
  %v886 = vcombine.low %v596, %v605
  %v888 = vunpack.c.l.s4 1983009808
  %v889 = vunpack.c.0.s8 %v888
  %v890 = vlaneseq
  %v891 = vshrl.u32 %v890, 7
  %v892 = vsub.s32 %v889, %v891
  %v893 = vrot.slane %v885, %v892
  %v895 = vunpack.c.l.s4 1983009808
  %v896 = vunpack.c.0.s8 %v895
  %v897 = vlaneseq
  %v898 = vshrl.u32 %v897, 7
  %v899 = vsub.s32 %v896, %v898
  %v900 = vrot.slane %v886, %v899
  %v901 = vcombine.low %v893, %v900
  %v902 = vcombine.low %v614, %v623
  %v903 = vcombine.low %v632, %v641
  %v905 = vunpack.c.l.s4 1983009808
  %v906 = vunpack.c.0.s8 %v905
  %v907 = vlaneseq
  %v908 = vshrl.u32 %v907, 7
  %v909 = vsub.s32 %v906, %v908
  %v910 = vrot.slane %v902, %v909
  %v912 = vunpack.c.l.s4 1983009808
  %v913 = vunpack.c.0.s8 %v912
  %v914 = vlaneseq
  %v915 = vshrl.u32 %v914, 7
  %v916 = vsub.s32 %v913, %v915
  %v917 = vrot.slane %v903, %v916
  %v918 = vcombine.low %v910, %v917
  %v919 = vcombine.low %v650, %v659
  %v920 = vcombine.low %v668, %v677
  %v922 = vunpack.c.l.s4 1983009808
  %v923 = vunpack.c.0.s8 %v922
  %v924 = vlaneseq
  %v925 = vshrl.u32 %v924, 7
  %v926 = vsub.s32 %v923, %v925
  %v927 = vrot.slane %v919, %v926
  %v929 = vunpack.c.l.s4 1983009808
  %v930 = vunpack.c.0.s8 %v929
  %v931 = vlaneseq
  %v932 = vshrl.u32 %v931, 7
  %v933 = vsub.s32 %v930, %v932
  %v934 = vrot.slane %v920, %v933
  %v935 = vcombine.low %v927, %v934
  %936 = vrot.lane.b32.xlu0 %v850, 8
  %v937 = vpop.permute.xlu0 %936
  %938 = vrot.lane.b32.xlu0 %v867, 8
  %v939 = vpop.permute.xlu0 %938
  %940 = vrot.lane.b32.xlu0 %v884, 8
  %v941 = vpop.permute.xlu0 %940
  %942 = vrot.lane.b32.xlu0 %v901, 8
  %v943 = vpop.permute.xlu0 %942
  %944 = vrot.lane.b32.xlu0 %v918, 8
  %v945 = vpop.permute.xlu0 %944
  %946 = vrot.lane.b32.xlu0 %v935, 8
  %v947 = vpop.permute.xlu0 %946
  %vm954 = vcmask 64512
  %v955 = vsel %vm954, %v718, %v937
  %v956 = vsel %vm954, %v735, %v939
  %v957 = vsel %vm954, %v752, %v941
  %v958 = vsel %vm954, %v769, %v943
  %v959 = vsel %vm954, %v786, %v945
  %v960 = vsel %vm954, %v803, %v947
  %961 = vrot.lane.b32.xlu0 %v217, 120
  %v962 = vpop.permute.xlu0 %961
  %963 = vrot.lane.b32.xlu0 %v225, 120
  %v964 = vpop.permute.xlu0 %963
  %965 = vrot.lane.b32.xlu0 %v224, 120
  %v966 = vpop.permute.xlu0 %965
  %967 = vrot.lane.b32.xlu0 %v226, 120
  %v968 = vpop.permute.xlu0 %967
  %969 = vrot.lane.b32.xlu0 %v234, 120
  %v970 = vpop.permute.xlu0 %969
  %971 = vrot.lane.b32.xlu0 %v242, 120
  %v972 = vpop.permute.xlu0 %971
  %973 = vrot.lane.b32.xlu0 %v241, 120
  %v974 = vpop.permute.xlu0 %973
  %975 = vrot.lane.b32.xlu0 %v243, 120
  %v976 = vpop.permute.xlu0 %975
  %977 = vrot.lane.b32.xlu0 %v251, 120
  %v978 = vpop.permute.xlu0 %977
  %979 = vrot.lane.b32.xlu0 %v259, 120
  %v980 = vpop.permute.xlu0 %979
  %981 = vrot.lane.b32.xlu0 %v258, 120
  %v982 = vpop.permute.xlu0 %981
  %983 = vrot.lane.b32.xlu0 %v260, 120
  %v984 = vpop.permute.xlu0 %983
  %985 = vrot.lane.b32.xlu0 %v268, 120
  %v986 = vpop.permute.xlu0 %985
  %987 = vrot.lane.b32.xlu0 %v276, 120
  %v988 = vpop.permute.xlu0 %987
  %989 = vrot.lane.b32.xlu0 %v275, 120
  %v990 = vpop.permute.xlu0 %989
  %991 = vrot.lane.b32.xlu0 %v277, 120
  %v992 = vpop.permute.xlu0 %991
  %993 = vrot.lane.b32.xlu0 %v285, 120
  %v994 = vpop.permute.xlu0 %993
  %995 = vrot.lane.b32.xlu0 %v293, 120
  %v996 = vpop.permute.xlu0 %995
  %997 = vrot.lane.b32.xlu0 %v292, 120
  %v998 = vpop.permute.xlu0 %997
  %999 = vrot.lane.b32.xlu0 %v294, 120
  %v1000 = vpop.permute.xlu0 %999
  %1001 = vrot.lane.b32.xlu0 %v302, 120
  %v1002 = vpop.permute.xlu0 %1001
  %1003 = vrot.lane.b32.xlu0 %v310, 120
  %v1004 = vpop.permute.xlu0 %1003
  %1005 = vrot.lane.b32.xlu0 %v309, 120
  %v1006 = vpop.permute.xlu0 %1005
  %1007 = vrot.lane.b32.xlu0 %v311, 120
  %v1008 = vpop.permute.xlu0 %1007
  %1009 = vrot.lane.b32.xlu0 %v319, 120
  %v1010 = vpop.permute.xlu0 %1009
  %1011 = vrot.lane.b32.xlu0 %v327, 120
  %v1012 = vpop.permute.xlu0 %1011
  %1013 = vrot.lane.b32.xlu0 %v326, 120
  %v1014 = vpop.permute.xlu0 %1013
  %1015 = vrot.lane.b32.xlu0 %v328, 120
  %v1016 = vpop.permute.xlu0 %1015
  %1017 = vrot.lane.b32.xlu0 %v336, 120
  %v1018 = vpop.permute.xlu0 %1017
  %1019 = vrot.lane.b32.xlu0 %v344, 120
  %v1020 = vpop.permute.xlu0 %1019
  %1021 = vrot.lane.b32.xlu0 %v343, 120
  %v1022 = vpop.permute.xlu0 %1021
  %1023 = vrot.lane.b32.xlu0 %v345, 120
  %v1024 = vpop.permute.xlu0 %1023
  %1025 = vrot.lane.b32.xlu0 %v353, 120
  %v1026 = vpop.permute.xlu0 %1025
  %1027 = vrot.lane.b32.xlu0 %v361, 120
  %v1028 = vpop.permute.xlu0 %1027
  %1029 = vrot.lane.b32.xlu0 %v360, 120
  %v1030 = vpop.permute.xlu0 %1029
  %1031 = vrot.lane.b32.xlu0 %v362, 120
  %v1032 = vpop.permute.xlu0 %1031
  %1033 = vrot.lane.b32.xlu0 %v370, 120
  %v1034 = vpop.permute.xlu0 %1033
  %1035 = vrot.lane.b32.xlu0 %v378, 120
  %v1036 = vpop.permute.xlu0 %1035
  %1037 = vrot.lane.b32.xlu0 %v377, 120
  %v1038 = vpop.permute.xlu0 %1037
  %1039 = vrot.lane.b32.xlu0 %v379, 120
  %v1040 = vpop.permute.xlu0 %1039
  %1041 = vrot.lane.b32.xlu0 %v387, 120
  %v1042 = vpop.permute.xlu0 %1041
  %1043 = vrot.lane.b32.xlu0 %v395, 120
  %v1044 = vpop.permute.xlu0 %1043
  %1045 = vrot.lane.b32.xlu0 %v394, 120
  %v1046 = vpop.permute.xlu0 %1045
  %1047 = vrot.lane.b32.xlu0 %v396, 120
  %v1048 = vpop.permute.xlu0 %1047
  %1049 = vrot.lane.b32.xlu0 %v404, 120
  %v1050 = vpop.permute.xlu0 %1049
  %1051 = vrot.lane.b32.xlu0 %v412, 120
  %v1052 = vpop.permute.xlu0 %1051
  %1053 = vrot.lane.b32.xlu0 %v411, 120
  %v1054 = vpop.permute.xlu0 %1053
  %1055 = vrot.lane.b32.xlu0 %v413, 120
  %v1056 = vpop.permute.xlu0 %1055
  %v1105 = vcombine.low %v962, %v964
  %v1107 = vunpack.c.l.s4 1934713408
  %v1108 = vunpack.c.0.s8 %v1107
  %v1109 = vlaneseq
  %v1110 = vshrl.u32 %v1109, 7
  %v1111 = vsub.s32 %v1108, %v1110
  %v1112 = vrot.slane %v1105, %v1111
  %v1113 = vcombine.high %v1112, 0.0
  %v1114 = vcombine.low %v966, %v968
  %v1116 = vunpack.c.l.s4 1934713408
  %v1117 = vunpack.c.0.s8 %v1116
  %v1118 = vlaneseq
  %v1119 = vshrl.u32 %v1118, 7
  %v1120 = vsub.s32 %v1117, %v1119
  %v1121 = vrot.slane %v1114, %v1120
  %v1122 = vcombine.high %v1121, 0.0
  %v1123 = vcombine.low %v970, %v972
  %v1125 = vunpack.c.l.s4 1934713408
  %v1126 = vunpack.c.0.s8 %v1125
  %v1127 = vlaneseq
  %v1128 = vshrl.u32 %v1127, 7
  %v1129 = vsub.s32 %v1126, %v1128
  %v1130 = vrot.slane %v1123, %v1129
  %v1131 = vcombine.high %v1130, 0.0
  %v1132 = vcombine.low %v974, %v976
  %v1134 = vunpack.c.l.s4 1934713408
  %v1135 = vunpack.c.0.s8 %v1134
  %v1136 = vlaneseq
  %v1137 = vshrl.u32 %v1136, 7
  %v1138 = vsub.s32 %v1135, %v1137
  %v1139 = vrot.slane %v1132, %v1138
  %v1140 = vcombine.high %v1139, 0.0
  %v1141 = vcombine.low %v978, %v980
  %v1143 = vunpack.c.l.s4 1934713408
  %v1144 = vunpack.c.0.s8 %v1143
  %v1145 = vlaneseq
  %v1146 = vshrl.u32 %v1145, 7
  %v1147 = vsub.s32 %v1144, %v1146
  %v1148 = vrot.slane %v1141, %v1147
  %v1149 = vcombine.high %v1148, 0.0
  %v1150 = vcombine.low %v982, %v984
  %v1152 = vunpack.c.l.s4 1934713408
  %v1153 = vunpack.c.0.s8 %v1152
  %v1154 = vlaneseq
  %v1155 = vshrl.u32 %v1154, 7
  %v1156 = vsub.s32 %v1153, %v1155
  %v1157 = vrot.slane %v1150, %v1156
  %v1158 = vcombine.high %v1157, 0.0
  %v1159 = vcombine.low %v986, %v988
  %v1161 = vunpack.c.l.s4 1934713408
  %v1162 = vunpack.c.0.s8 %v1161
  %v1163 = vlaneseq
  %v1164 = vshrl.u32 %v1163, 7
  %v1165 = vsub.s32 %v1162, %v1164
  %v1166 = vrot.slane %v1159, %v1165
  %v1167 = vcombine.high %v1166, 0.0
  %v1168 = vcombine.low %v990, %v992
  %v1170 = vunpack.c.l.s4 1934713408
  %v1171 = vunpack.c.0.s8 %v1170
  %v1172 = vlaneseq
  %v1173 = vshrl.u32 %v1172, 7
  %v1174 = vsub.s32 %v1171, %v1173
  %v1175 = vrot.slane %v1168, %v1174
  %v1176 = vcombine.high %v1175, 0.0
  %v1177 = vcombine.low %v994, %v996
  %v1179 = vunpack.c.l.s4 1934713408
  %v1180 = vunpack.c.0.s8 %v1179
  %v1181 = vlaneseq
  %v1182 = vshrl.u32 %v1181, 7
  %v1183 = vsub.s32 %v1180, %v1182
  %v1184 = vrot.slane %v1177, %v1183
  %v1185 = vcombine.high %v1184, 0.0
  %v1186 = vcombine.low %v998, %v1000
  %v1188 = vunpack.c.l.s4 1934713408
  %v1189 = vunpack.c.0.s8 %v1188
  %v1190 = vlaneseq
  %v1191 = vshrl.u32 %v1190, 7
  %v1192 = vsub.s32 %v1189, %v1191
  %v1193 = vrot.slane %v1186, %v1192
  %v1194 = vcombine.high %v1193, 0.0
  %v1195 = vcombine.low %v1002, %v1004
  %v1197 = vunpack.c.l.s4 1934713408
  %v1198 = vunpack.c.0.s8 %v1197
  %v1199 = vlaneseq
  %v1200 = vshrl.u32 %v1199, 7
  %v1201 = vsub.s32 %v1198, %v1200
  %v1202 = vrot.slane %v1195, %v1201
  %v1203 = vcombine.high %v1202, 0.0
  %v1204 = vcombine.low %v1006, %v1008
  %v1206 = vunpack.c.l.s4 1934713408
  %v1207 = vunpack.c.0.s8 %v1206
  %v1208 = vlaneseq
  %v1209 = vshrl.u32 %v1208, 7
  %v1210 = vsub.s32 %v1207, %v1209
  %v1211 = vrot.slane %v1204, %v1210
  %v1212 = vcombine.high %v1211, 0.0
  %v1213 = vcombine.low %v1010, %v1012
  %v1215 = vunpack.c.l.s4 1934713408
  %v1216 = vunpack.c.0.s8 %v1215
  %v1217 = vlaneseq
  %v1218 = vshrl.u32 %v1217, 7
  %v1219 = vsub.s32 %v1216, %v1218
  %v1220 = vrot.slane %v1213, %v1219
  %v1221 = vcombine.high %v1220, 0.0
  %v1222 = vcombine.low %v1014, %v1016
  %v1224 = vunpack.c.l.s4 1934713408
  %v1225 = vunpack.c.0.s8 %v1224
  %v1226 = vlaneseq
  %v1227 = vshrl.u32 %v1226, 7
  %v1228 = vsub.s32 %v1225, %v1227
  %v1229 = vrot.slane %v1222, %v1228
  %v1230 = vcombine.high %v1229, 0.0
  %v1231 = vcombine.low %v1018, %v1020
  %v1233 = vunpack.c.l.s4 1934713408
  %v1234 = vunpack.c.0.s8 %v1233
  %v1235 = vlaneseq
  %v1236 = vshrl.u32 %v1235, 7
  %v1237 = vsub.s32 %v1234, %v1236
  %v1238 = vrot.slane %v1231, %v1237
  %v1239 = vcombine.high %v1238, 0.0
  %v1240 = vcombine.low %v1022, %v1024
  %v1242 = vunpack.c.l.s4 1934713408
  %v1243 = vunpack.c.0.s8 %v1242
  %v1244 = vlaneseq
  %v1245 = vshrl.u32 %v1244, 7
  %v1246 = vsub.s32 %v1243, %v1245
  %v1247 = vrot.slane %v1240, %v1246
  %v1248 = vcombine.high %v1247, 0.0
  %v1249 = vcombine.low %v1026, %v1028
  %v1251 = vunpack.c.l.s4 1934713408
  %v1252 = vunpack.c.0.s8 %v1251
  %v1253 = vlaneseq
  %v1254 = vshrl.u32 %v1253, 7
  %v1255 = vsub.s32 %v1252, %v1254
  %v1256 = vrot.slane %v1249, %v1255
  %v1257 = vcombine.high %v1256, 0.0
  %v1258 = vcombine.low %v1030, %v1032
  %v1260 = vunpack.c.l.s4 1934713408
  %v1261 = vunpack.c.0.s8 %v1260
  %v1262 = vlaneseq
  %v1263 = vshrl.u32 %v1262, 7
  %v1264 = vsub.s32 %v1261, %v1263
  %v1265 = vrot.slane %v1258, %v1264
  %v1266 = vcombine.high %v1265, 0.0
  %v1267 = vcombine.low %v1034, %v1036
  %v1269 = vunpack.c.l.s4 1934713408
  %v1270 = vunpack.c.0.s8 %v1269
  %v1271 = vlaneseq
  %v1272 = vshrl.u32 %v1271, 7
  %v1273 = vsub.s32 %v1270, %v1272
  %v1274 = vrot.slane %v1267, %v1273
  %v1275 = vcombine.high %v1274, 0.0
  %v1276 = vcombine.low %v1038, %v1040
  %v1278 = vunpack.c.l.s4 1934713408
  %v1279 = vunpack.c.0.s8 %v1278
  %v1280 = vlaneseq
  %v1281 = vshrl.u32 %v1280, 7
  %v1282 = vsub.s32 %v1279, %v1281
  %v1283 = vrot.slane %v1276, %v1282
  %v1284 = vcombine.high %v1283, 0.0
  %v1285 = vcombine.low %v1042, %v1044
  %v1287 = vunpack.c.l.s4 1934713408
  %v1288 = vunpack.c.0.s8 %v1287
  %v1289 = vlaneseq
  %v1290 = vshrl.u32 %v1289, 7
  %v1291 = vsub.s32 %v1288, %v1290
  %v1292 = vrot.slane %v1285, %v1291
  %v1293 = vcombine.high %v1292, 0.0
  %v1294 = vcombine.low %v1046, %v1048
  %v1296 = vunpack.c.l.s4 1934713408
  %v1297 = vunpack.c.0.s8 %v1296
  %v1298 = vlaneseq
  %v1299 = vshrl.u32 %v1298, 7
  %v1300 = vsub.s32 %v1297, %v1299
  %v1301 = vrot.slane %v1294, %v1300
  %v1302 = vcombine.high %v1301, 0.0
  %v1303 = vcombine.low %v1050, %v1052
  %v1305 = vunpack.c.l.s4 1934713408
  %v1306 = vunpack.c.0.s8 %v1305
  %v1307 = vlaneseq
  %v1308 = vshrl.u32 %v1307, 7
  %v1309 = vsub.s32 %v1306, %v1308
  %v1310 = vrot.slane %v1303, %v1309
  %v1311 = vcombine.high %v1310, 0.0
  %v1312 = vcombine.low %v1054, %v1056
  %v1314 = vunpack.c.l.s4 1934713408
  %v1315 = vunpack.c.0.s8 %v1314
  %v1316 = vlaneseq
  %v1317 = vshrl.u32 %v1316, 7
  %v1318 = vsub.s32 %v1315, %v1317
  %v1319 = vrot.slane %v1312, %v1318
  %v1320 = vcombine.high %v1319, 0.0
  %v1345 = vcombine.low %v1112, %v1121
  %v1346 = vcombine.low %v1130, %v1139
  %v1348 = vunpack.c.l.s4 1983009808
  %v1349 = vunpack.c.0.s8 %v1348
  %v1350 = vlaneseq
  %v1351 = vshrl.u32 %v1350, 7
  %v1352 = vsub.s32 %v1349, %v1351
  %v1353 = vrot.slane %v1345, %v1352
  %v1355 = vunpack.c.l.s4 1983009808
  %v1356 = vunpack.c.0.s8 %v1355
  %v1357 = vlaneseq
  %v1358 = vshrl.u32 %v1357, 7
  %v1359 = vsub.s32 %v1356, %v1358
  %v1360 = vrot.slane %v1346, %v1359
  %v1361 = vcombine.low %v1353, %v1360
  %v1362 = vcombine.low %v1148, %v1157
  %v1363 = vcombine.low %v1166, %v1175
  %v1365 = vunpack.c.l.s4 1983009808
  %v1366 = vunpack.c.0.s8 %v1365
  %v1367 = vlaneseq
  %v1368 = vshrl.u32 %v1367, 7
  %v1369 = vsub.s32 %v1366, %v1368
  %v1370 = vrot.slane %v1362, %v1369
  %v1372 = vunpack.c.l.s4 1983009808
  %v1373 = vunpack.c.0.s8 %v1372
  %v1374 = vlaneseq
  %v1375 = vshrl.u32 %v1374, 7
  %v1376 = vsub.s32 %v1373, %v1375
  %v1377 = vrot.slane %v1363, %v1376
  %v1378 = vcombine.low %v1370, %v1377
  %v1379 = vcombine.low %v1184, %v1193
  %v1380 = vcombine.low %v1202, %v1211
  %v1382 = vunpack.c.l.s4 1983009808
  %v1383 = vunpack.c.0.s8 %v1382
  %v1384 = vlaneseq
  %v1385 = vshrl.u32 %v1384, 7
  %v1386 = vsub.s32 %v1383, %v1385
  %v1387 = vrot.slane %v1379, %v1386
  %v1389 = vunpack.c.l.s4 1983009808
  %v1390 = vunpack.c.0.s8 %v1389
  %v1391 = vlaneseq
  %v1392 = vshrl.u32 %v1391, 7
  %v1393 = vsub.s32 %v1390, %v1392
  %v1394 = vrot.slane %v1380, %v1393
  %v1395 = vcombine.low %v1387, %v1394
  %v1396 = vcombine.low %v1220, %v1229
  %v1397 = vcombine.low %v1238, %v1247
  %v1399 = vunpack.c.l.s4 1983009808
  %v1400 = vunpack.c.0.s8 %v1399
  %v1401 = vlaneseq
  %v1402 = vshrl.u32 %v1401, 7
  %v1403 = vsub.s32 %v1400, %v1402
  %v1404 = vrot.slane %v1396, %v1403
  %v1406 = vunpack.c.l.s4 1983009808
  %v1407 = vunpack.c.0.s8 %v1406
  %v1408 = vlaneseq
  %v1409 = vshrl.u32 %v1408, 7
  %v1410 = vsub.s32 %v1407, %v1409
  %v1411 = vrot.slane %v1397, %v1410
  %v1412 = vcombine.low %v1404, %v1411
  %v1413 = vcombine.low %v1256, %v1265
  %v1414 = vcombine.low %v1274, %v1283
  %v1416 = vunpack.c.l.s4 1983009808
  %v1417 = vunpack.c.0.s8 %v1416
  %v1418 = vlaneseq
  %v1419 = vshrl.u32 %v1418, 7
  %v1420 = vsub.s32 %v1417, %v1419
  %v1421 = vrot.slane %v1413, %v1420
  %v1423 = vunpack.c.l.s4 1983009808
  %v1424 = vunpack.c.0.s8 %v1423
  %v1425 = vlaneseq
  %v1426 = vshrl.u32 %v1425, 7
  %v1427 = vsub.s32 %v1424, %v1426
  %v1428 = vrot.slane %v1414, %v1427
  %v1429 = vcombine.low %v1421, %v1428
  %v1430 = vcombine.low %v1292, %v1301
  %v1431 = vcombine.low %v1310, %v1319
  %v1433 = vunpack.c.l.s4 1983009808
  %v1434 = vunpack.c.0.s8 %v1433
  %v1435 = vlaneseq
  %v1436 = vshrl.u32 %v1435, 7
  %v1437 = vsub.s32 %v1434, %v1436
  %v1438 = vrot.slane %v1430, %v1437
  %v1440 = vunpack.c.l.s4 1983009808
  %v1441 = vunpack.c.0.s8 %v1440
  %v1442 = vlaneseq
  %v1443 = vshrl.u32 %v1442, 7
  %v1444 = vsub.s32 %v1441, %v1443
  %v1445 = vrot.slane %v1431, %v1444
  %v1446 = vcombine.low %v1438, %v1445
  %v1477 = vcombine.low %v1113, %v1122
  %v1478 = vcombine.low %v1131, %v1140
  %v1480 = vunpack.c.l.s4 1983009808
  %v1481 = vunpack.c.0.s8 %v1480
  %v1482 = vlaneseq
  %v1483 = vshrl.u32 %v1482, 7
  %v1484 = vsub.s32 %v1481, %v1483
  %v1485 = vrot.slane %v1477, %v1484
  %v1487 = vunpack.c.l.s4 1983009808
  %v1488 = vunpack.c.0.s8 %v1487
  %v1489 = vlaneseq
  %v1490 = vshrl.u32 %v1489, 7
  %v1491 = vsub.s32 %v1488, %v1490
  %v1492 = vrot.slane %v1478, %v1491
  %v1493 = vcombine.low %v1485, %v1492
  %v1494 = vcombine.low %v1149, %v1158
  %v1495 = vcombine.low %v1167, %v1176
  %v1497 = vunpack.c.l.s4 1983009808
  %v1498 = vunpack.c.0.s8 %v1497
  %v1499 = vlaneseq
  %v1500 = vshrl.u32 %v1499, 7
  %v1501 = vsub.s32 %v1498, %v1500
  %v1502 = vrot.slane %v1494, %v1501
  %v1504 = vunpack.c.l.s4 1983009808
  %v1505 = vunpack.c.0.s8 %v1504
  %v1506 = vlaneseq
  %v1507 = vshrl.u32 %v1506, 7
  %v1508 = vsub.s32 %v1505, %v1507
  %v1509 = vrot.slane %v1495, %v1508
  %v1510 = vcombine.low %v1502, %v1509
  %v1511 = vcombine.low %v1185, %v1194
  %v1512 = vcombine.low %v1203, %v1212
  %v1514 = vunpack.c.l.s4 1983009808
  %v1515 = vunpack.c.0.s8 %v1514
  %v1516 = vlaneseq
  %v1517 = vshrl.u32 %v1516, 7
  %v1518 = vsub.s32 %v1515, %v1517
  %v1519 = vrot.slane %v1511, %v1518
  %v1521 = vunpack.c.l.s4 1983009808
  %v1522 = vunpack.c.0.s8 %v1521
  %v1523 = vlaneseq
  %v1524 = vshrl.u32 %v1523, 7
  %v1525 = vsub.s32 %v1522, %v1524
  %v1526 = vrot.slane %v1512, %v1525
  %v1527 = vcombine.low %v1519, %v1526
  %v1528 = vcombine.low %v1221, %v1230
  %v1529 = vcombine.low %v1239, %v1248
  %v1531 = vunpack.c.l.s4 1983009808
  %v1532 = vunpack.c.0.s8 %v1531
  %v1533 = vlaneseq
  %v1534 = vshrl.u32 %v1533, 7
  %v1535 = vsub.s32 %v1532, %v1534
  %v1536 = vrot.slane %v1528, %v1535
  %v1538 = vunpack.c.l.s4 1983009808
  %v1539 = vunpack.c.0.s8 %v1538
  %v1540 = vlaneseq
  %v1541 = vshrl.u32 %v1540, 7
  %v1542 = vsub.s32 %v1539, %v1541
  %v1543 = vrot.slane %v1529, %v1542
  %v1544 = vcombine.low %v1536, %v1543
  %v1545 = vcombine.low %v1257, %v1266
  %v1546 = vcombine.low %v1275, %v1284
  %v1548 = vunpack.c.l.s4 1983009808
  %v1549 = vunpack.c.0.s8 %v1548
  %v1550 = vlaneseq
  %v1551 = vshrl.u32 %v1550, 7
  %v1552 = vsub.s32 %v1549, %v1551
  %v1553 = vrot.slane %v1545, %v1552
  %v1555 = vunpack.c.l.s4 1983009808
  %v1556 = vunpack.c.0.s8 %v1555
  %v1557 = vlaneseq
  %v1558 = vshrl.u32 %v1557, 7
  %v1559 = vsub.s32 %v1556, %v1558
  %v1560 = vrot.slane %v1546, %v1559
  %v1561 = vcombine.low %v1553, %v1560
  %v1562 = vcombine.low %v1293, %v1302
  %v1563 = vcombine.low %v1311, %v1320
  %v1565 = vunpack.c.l.s4 1983009808
  %v1566 = vunpack.c.0.s8 %v1565
  %v1567 = vlaneseq
  %v1568 = vshrl.u32 %v1567, 7
  %v1569 = vsub.s32 %v1566, %v1568
  %v1570 = vrot.slane %v1562, %v1569
  %v1572 = vunpack.c.l.s4 1983009808
  %v1573 = vunpack.c.0.s8 %v1572
  %v1574 = vlaneseq
  %v1575 = vshrl.u32 %v1574, 7
  %v1576 = vsub.s32 %v1573, %v1575
  %v1577 = vrot.slane %v1563, %v1576
  %v1578 = vcombine.low %v1570, %v1577
  %1579 = vrot.lane.b32.xlu0 %v1493, 8
  %v1580 = vpop.permute.xlu0 %1579
  %1581 = vrot.lane.b32.xlu0 %v1510, 8
  %v1582 = vpop.permute.xlu0 %1581
  %1583 = vrot.lane.b32.xlu0 %v1527, 8
  %v1584 = vpop.permute.xlu0 %1583
  %1585 = vrot.lane.b32.xlu0 %v1544, 8
  %v1586 = vpop.permute.xlu0 %1585
  %1587 = vrot.lane.b32.xlu0 %v1561, 8
  %v1588 = vpop.permute.xlu0 %1587
  %1589 = vrot.lane.b32.xlu0 %v1578, 8
  %v1590 = vpop.permute.xlu0 %1589
  %v1597 = vsel %vm954, %v1361, %v1580
  %v1598 = vsel %vm954, %v1378, %v1582
  %v1599 = vsel %vm954, %v1395, %v1584
  %v1600 = vsel %vm954, %v1412, %v1586
  %v1601 = vsel %vm954, %v1429, %v1588
  %v1602 = vsel %vm954, %v1446, %v1590
  %v1603 = vld [vmem:[%s4] sm:$0x3]
  %v1604 = vld [vmem:[%s2] sm:$0xff]
  %v1605 = vld [vmem:[%s2 + $0x8] sm:$0xff]
  %v1606 = vld [vmem:[%s2 + $0x10] sm:$0xff]
  %v1607 = vlaneseq
  %v1608 = vshrl.u32 %v1607, 7
  %v1609 = vsub.s32 0, %v1608
  %v1610 = vrot.slane %v1603, %v1609
  %vm1611 = vcmask 392192
  %v1613 = vsel %vm1611, %v1604, 0
  %v1616 = vsel %vm1611, %v1605, 0
  %v1619 = vsel %vm1611, %v1606, 0
  %1621 = vmatprep.subr.mxu0 0.0
  %1622 = vmatpush1.msra.mxu0 0.0
  %1623 = vmatprep.subr.mxu0 0.0
  %1624 = vmatpush1.msra.mxu0 0.0
  %1625 = vmatprep.subr.mxu0 0.0
  %1626 = vmatpush1.msra.mxu0 0.0
  %1627 = vmatprep.subr.mxu0 0.0
  %1628 = vmatpush1.msra.mxu0 0.0
  %1629 = vmatprep.subr.mxu0 0.0
  %1630 = vmatpush1.msra.mxu0 0.0
  %1631 = vmatprep.subr.mxu0 0.0
  %1632 = vmatpush1.msra.mxu0 0.0
  %1633 = vmatprep.subr.mxu0 0.0
  %1634 = vmatpush1.msra.mxu0 0.0
  %1635 = vmatprep.subr.mxu0 0.0
  %1636 = vmatpush1.msra.mxu0 0.0
  %1637 = vmatprep.subr.mxu0 0.0
  %1638 = vmatpush1.msra.mxu0 0.0
  %1639 = vmatprep.subr.mxu0 0.0
  %1640 = vmatpush1.msra.mxu0 0.0
  %1641 = vmatprep.subr.mxu0 0.0
  %1642 = vmatpush1.msra.mxu0 %v960
  %1643 = vmatprep.subr.mxu0 0.0
  %1644 = vmatpush1.msra.mxu0 %v959
  %1645 = vmatprep.subr.mxu0 0.0
  %1646 = vmatpush1.msra.mxu0 %v958
  %1647 = vmatprep.subr.mxu0 0.0
  %1648 = vmatpush1.msra.mxu0 %v957
  %1649 = vmatprep.subr.mxu0 0.0
  %1650 = vmatpush1.msra.mxu0 %v956
  %1651 = vmatprep.subr.mxu0 0.0
  %1652 = vmatpush1.msra.mxu0 %v955
  %1653 = vmatprep.subr.mxu0 0.0
  %1654 = vmatpush2.msra.mxu0 0.0
  %1655 = vmatprep.subr.mxu0 0.0
  %1656 = vmatpush2.msra.mxu0 0.0
  %1657 = vmatprep.subr.mxu0 0.0
  %1658 = vmatpush2.msra.mxu0 0.0
  %1659 = vmatprep.subr.mxu0 0.0
  %1660 = vmatpush2.msra.mxu0 0.0
  %1661 = vmatprep.subr.mxu0 0.0
  %1662 = vmatpush2.msra.mxu0 0.0
  %1663 = vmatprep.subr.mxu0 0.0
  %1664 = vmatpush2.msra.mxu0 0.0
  %1665 = vmatprep.subr.mxu0 0.0
  %1666 = vmatpush2.msra.mxu0 0.0
  %1667 = vmatprep.subr.mxu0 0.0
  %1668 = vmatpush2.msra.mxu0 0.0
  %1669 = vmatprep.subr.mxu0 0.0
  %1670 = vmatpush2.msra.mxu0 0.0
  %1671 = vmatprep.subr.mxu0 0.0
  %1672 = vmatpush2.msra.mxu0 0.0
  %1673 = vmatprep.subr.mxu0 0.0
  %1674 = vmatpush2.msra.mxu0 0.0
  %1675 = vmatprep.subr.mxu0 0.0
  %1676 = vmatpush2.msra.mxu0 0.0
  %1677 = vmatprep.subr.mxu0 0.0
  %1678 = vmatpush2.msra.mxu0 0.0
  %1679 = vmatprep.subr.mxu0 0.0
  %1680 = vmatpush2.msra.mxu0 0.0
  %1681 = vmatprep.subr.mxu0 0.0
  %1682 = vmatpush2.msra.mxu0 0.0
  %1683 = vmatprep.subr.mxu0 0.0
  %1684 = vmatpush2.msra.mxu0 0.0
  %1685 = vmatprep.mubr.f32.mxu0 0.0
  %1686 = vmatmul.mubr.f32.gmra.mxu0 %v1613
  %v1687 = vpop.f32.mrf.mxu0
  %v1688 = vadd.f32 %v1610, %v1687
  %v1689 = vpop.f32.mrf.mxu0
  %1690 = vmatprep.mubr.f32.mxu0 0.0
  %1691 = vmatmul.mubr.f32.gmra.mxu0 %v1616
  %v1692 = vpop.f32.mrf.mxu0
  %v1693 = vadd.f32 %v1610, %v1692
  %v1694 = vpop.f32.mrf.mxu0
  %1695 = vmatprep.mubr.f32.mxu0 0.0
  %1696 = vmatmul.mubr.f32.gmra.mxu0 %v1619
  %v1697 = vpop.f32.mrf.mxu0
  %v1698 = vadd.f32 %v1610, %v1697
  %v1699 = vpop.f32.mrf.mxu0
  %1700 = vdwg.mxu0
  %v1701 = vld [vmem:[%s3] sm:$0xff]
  %v1702 = vld [vmem:[%s3 + $0x8] sm:$0xff]
  %v1703 = vld [vmem:[%s3 + $0x10] sm:$0xff]
  %v1704 = vlaneseq
  %v1705 = vshrl.u32 %v1704, 7
  %v1706 = vsub.s32 1, %v1705
  %v1707 = vrot.slane %v1603, %v1706
  %v1709 = vsel %vm1611, %v1701, 0
  %v1712 = vsel %vm1611, %v1702, 0
  %v1715 = vsel %vm1611, %v1703, 0
  %1717 = vmatprep.subr.mxu0 0.0
  %1718 = vmatpush1.msra.mxu0 0.0
  %1719 = vmatprep.subr.mxu0 0.0
  %1720 = vmatpush1.msra.mxu0 0.0
  %1721 = vmatprep.subr.mxu0 0.0
  %1722 = vmatpush1.msra.mxu0 0.0
  %1723 = vmatprep.subr.mxu0 0.0
  %1724 = vmatpush1.msra.mxu0 0.0
  %1725 = vmatprep.subr.mxu0 0.0
  %1726 = vmatpush1.msra.mxu0 0.0
  %1727 = vmatprep.subr.mxu0 0.0
  %1728 = vmatpush1.msra.mxu0 0.0
  %1729 = vmatprep.subr.mxu0 0.0
  %1730 = vmatpush1.msra.mxu0 0.0
  %1731 = vmatprep.subr.mxu0 0.0
  %1732 = vmatpush1.msra.mxu0 0.0
  %1733 = vmatprep.subr.mxu0 0.0
  %1734 = vmatpush1.msra.mxu0 0.0
  %1735 = vmatprep.subr.mxu0 0.0
  %1736 = vmatpush1.msra.mxu0 0.0
  %1737 = vmatprep.subr.mxu0 0.0
  %1738 = vmatpush1.msra.mxu0 %v1602
  %1739 = vmatprep.subr.mxu0 0.0
  %1740 = vmatpush1.msra.mxu0 %v1601
  %1741 = vmatprep.subr.mxu0 0.0
  %1742 = vmatpush1.msra.mxu0 %v1600
  %1743 = vmatprep.subr.mxu0 0.0
  %1744 = vmatpush1.msra.mxu0 %v1599
  %1745 = vmatprep.subr.mxu0 0.0
  %1746 = vmatpush1.msra.mxu0 %v1598
  %1747 = vmatprep.subr.mxu0 0.0
  %1748 = vmatpush1.msra.mxu0 %v1597
  %1749 = vmatprep.subr.mxu0 0.0
  %1750 = vmatpush2.msra.mxu0 0.0
  %1751 = vmatprep.subr.mxu0 0.0
  %1752 = vmatpush2.msra.mxu0 0.0
  %1753 = vmatprep.subr.mxu0 0.0
  %1754 = vmatpush2.msra.mxu0 0.0
  %1755 = vmatprep.subr.mxu0 0.0
  %1756 = vmatpush2.msra.mxu0 0.0
  %1757 = vmatprep.subr.mxu0 0.0
  %1758 = vmatpush2.msra.mxu0 0.0
  %1759 = vmatprep.subr.mxu0 0.0
  %1760 = vmatpush2.msra.mxu0 0.0
  %1761 = vmatprep.subr.mxu0 0.0
  %1762 = vmatpush2.msra.mxu0 0.0
  %1763 = vmatprep.subr.mxu0 0.0
  %1764 = vmatpush2.msra.mxu0 0.0
  %1765 = vmatprep.subr.mxu0 0.0
  %1766 = vmatpush2.msra.mxu0 0.0
  %1767 = vmatprep.subr.mxu0 0.0
  %1768 = vmatpush2.msra.mxu0 0.0
  %1769 = vmatprep.subr.mxu0 0.0
  %1770 = vmatpush2.msra.mxu0 0.0
  %1771 = vmatprep.subr.mxu0 0.0
  %1772 = vmatpush2.msra.mxu0 0.0
  %1773 = vmatprep.subr.mxu0 0.0
  %1774 = vmatpush2.msra.mxu0 0.0
  %1775 = vmatprep.subr.mxu0 0.0
  %1776 = vmatpush2.msra.mxu0 0.0
  %1777 = vmatprep.subr.mxu0 0.0
  %1778 = vmatpush2.msra.mxu0 0.0
  %1779 = vmatprep.subr.mxu0 0.0
  %1780 = vmatpush2.msra.mxu0 0.0
  %1781 = vmatprep.mubr.f32.mxu0 0.0
  %1782 = vmatmul.mubr.f32.gmra.mxu0 %v1709
  %v1783 = vpop.f32.mrf.mxu0
  %v1784 = vadd.f32 %v1707, %v1783
  %v1785 = vpop.f32.mrf.mxu0
  %1786 = vmatprep.mubr.f32.mxu0 0.0
  %1787 = vmatmul.mubr.f32.gmra.mxu0 %v1712
  %v1788 = vpop.f32.mrf.mxu0
  %v1789 = vadd.f32 %v1707, %v1788
  %v1790 = vpop.f32.mrf.mxu0
  %1791 = vmatprep.mubr.f32.mxu0 0.0
  %1792 = vmatmul.mubr.f32.gmra.mxu0 %v1715
  %v1793 = vpop.f32.mrf.mxu0
  %v1794 = vadd.f32 %v1707, %v1793
  %v1795 = vpop.f32.mrf.mxu0
  %1796 = vdwg.mxu0
  %1797 = vst.msk [vmem:[%s5] sm:$0xff] %vm36, %v1688
  %1798 = vst.msk [vmem:[%s5 + $0x8] sm:$0xff] %vm36, %v1693
  %1799 = vst.msk [vmem:[%s5 + $0x10] sm:$0xff] %vm36, %v1698
  %v1800 = vmax.f32 %v1784, -20.0
  %v1801 = vmax.f32 %v1789, -20.0
  %v1802 = vmax.f32 %v1794, -20.0
  %v1803 = vmin.f32 %v1800, 3.0
  %v1804 = vmin.f32 %v1801, 3.0
  %v1805 = vmin.f32 %v1802, 3.0
  %1806 = vst.msk [vmem:[%s6] sm:$0xff] %vm36, %v1803
  %1807 = vst.msk [vmem:[%s6 + $0x8] sm:$0xff] %vm36, %v1804
  %1808 = vst.msk [vmem:[%s6 + $0x10] sm:$0xff] %vm36, %v1805
  // Predicated region
  $region22: #{tpu_custom_call.1} parent=0 // pred_check
    _
  $region23: #{tpu_custom_call.1} parent=0 // pred_check_branch
    %1810 = sbr.rel (0) target = $region25
  $region24: #{tpu_custom_call.1} parent=0 // pred_region
    _
  $region25: #{tpu_custom_call.1} parent=0 // pred_fallthru
    _
  // Predicated region
  $region26: #{tpu_custom_call.1} parent=0 // pred_check
    _
  $region27: #{tpu_custom_call.1} parent=0 // pred_check_branch
    %1812 = sbr.rel (0) target = $region29
  $region28: #{tpu_custom_call.1} parent=0 // pred_region
    _
  $region29: #{tpu_custom_call.1} parent=0 // pred_fallthru
    _
  // Predicated region
  $region30: #{tpu_custom_call.1} parent=0 // pred_check
    _
  $region31: #{tpu_custom_call.1} parent=0 // pred_check_branch
    %1814 = sbr.rel (0) target = $region33
  $region32: #{tpu_custom_call.1} parent=0 // pred_region
    _
  $region33: #{tpu_custom_call.1} parent=0 // pred_fallthru
    _
  // Predicated region
  $region34: #{tpu_custom_call.1} parent=0 // pred_check
    _
  $region35: #{tpu_custom_call.1} parent=0 // pred_check_branch
    %1816 = sbr.rel (0) target = $region37
  $region36: #{tpu_custom_call.1} parent=0 // pred_region
    _
  $region37: #{tpu_custom_call.1} parent=0 // pred_fallthru
    _

</llo_original>
